<compile_context>
chip_gen: v7x
topology: tpu7x:2x2x1
jax: 0.10.0
libtpu: 0.0.40
codegen_flags: <defaults>
</compile_context>

<pallas_src>
import jax
import jax.numpy as jnp
from jax.experimental import pallas as pl
from jax.experimental.pallas import tpu as pltpu


def _round_up(x, m):
    return (x + m - 1) // m * m


def _block_diag(mats):
    """mats: (P, fin, fout) stacked per-slice weights -> (P*fin, P*fout) block-diagonal."""
    P, fin, fout = mats.shape
    out = jnp.zeros((P * fin, P * fout), mats.dtype)
    for i in range(P):
        out = out.at[i * fin:(i + 1) * fin, i * fout:(i + 1) * fout].set(mats[i])
    return out


# ---------------------------------------------------------------------------
# Kernel: 5 dense layers on one batch tile, all weights VMEM-resident (bf16),
# f32 MXU accumulation, f32 biases, lane-dense transposed output.
# ---------------------------------------------------------------------------
def _slice_mlp_multinet_kernel(
    x_ref,              # (TB, C*P*P)   input tile (any float dtype; cast in-kernel)
    w1_ref, b1_ref,     # (C*P*P, P*H) bf16, (1, P*H) f32   permuted block-diag layer 1
    w2_ref, b2_ref,     # (P*H, P*H)   bf16, (1, P*H) f32   block-diag layer 2
    wf_ref, bf_ref,     # (P*H, CHp)   bf16, (1, CHp) f32   fused slice-3 @ combine-1
    cw2_ref, cb2_ref,   # (CHp, CHp)   bf16, (1, CHp) f32   combine layer 2
    cw3_ref, cb3_ref,   # (CHp, O_pad8) bf16, (1, O_pad8) f32  combine layer 3
    out_ref,            # (O_pad8, TB) f32  (batch on the lane axis -> lane-dense store)
):
    cd = w1_ref.dtype
    x = x_ref[...].astype(cd)
    h = jnp.dot(x, w1_ref[...], preferred_element_type=jnp.float32) + b1_ref[...]
    h = jnp.maximum(h, 0.0).astype(cd)
    h = jnp.dot(h, w2_ref[...], preferred_element_type=jnp.float32) + b2_ref[...]
    h = jnp.maximum(h, 0.0).astype(cd)
    h = jnp.dot(h, wf_ref[...], preferred_element_type=jnp.float32) + bf_ref[...]
    h = jnp.maximum(h, 0.0).astype(cd)
    h = jnp.dot(h, cw2_ref[...], preferred_element_type=jnp.float32) + cb2_ref[...]
    h = jnp.maximum(h, 0.0).astype(cd)
    y = jnp.dot(h, cw3_ref[...], preferred_element_type=jnp.float32) + cb3_ref[...]
    # Small (TB, O_pad8) -> (O_pad8, TB) XLU transpose so the HBM store is lane-dense.
    out_ref[...] = jnp.transpose(y).astype(out_ref.dtype)


# ---------------------------------------------------------------------------
# One-time parameter fusion: block-diagonalization, input-permutation folding,
# slice-3/combine-1 fusion, lane padding, bf16 cast.
# ---------------------------------------------------------------------------
def fuse_params(params, *, n_projections, patch_size, output_size,
                lane=128, sublane=8, compute_dtype=jnp.bfloat16):
    (w1, b1, w2, b2, w3, b3, cw1, cb1, cw2, cb2, cw3, cb3) = params
    P = patch_size
    C = n_projections

    # Block-diagonal slice layers: one big matmul each instead of P small ones.
    w1_bd = _block_diag(w1)                    # (P*C*P, P*H)
    w2_bd = _block_diag(w2)                    # (P*H, P*H)
    w3_bd = _block_diag(w3)                    # (P*H, P*M)
    b1_cat = b1.reshape(1, -1)                 # (1, P*H)
    b2_cat = b2.reshape(1, -1)                 # (1, P*H)
    b3_cat = b3.reshape(1, -1)                 # (1, P*M)

    # Fold the module's permute(0,2,1,3) into w1: original row index (p, c, q) becomes
    # (c, p, q), so the kernel consumes a plain x.reshape(B, C*P*P) (no XLA transpose).
    N1 = w1_bd.shape[1]
    w1_perm = (w1_bd.reshape(P, C, P, N1)
                     .transpose(1, 0, 2, 3)
                     .reshape(C * P * P, N1))

    # Fuse slice output layer into the first combine layer (no activation in between).
    wf = w3_bd @ cw1                           # (P*H, CH)
    bf = b3_cat @ cw1 + cb1                    # (1, CH)

    # Pad the combine width to a multiple of 128 lanes (exact: padded lanes stay zero
    # through bias-add and ReLU and contribute nothing downstream).
    CH = cw1.shape[1]
    CH_pad = _round_up(CH, lane)

    def pad_cols(a, n):
        return jnp.pad(a, ((0, 0), (0, n - a.shape[1])))

    wf_p = pad_cols(wf, CH_pad)
    bf_p = pad_cols(bf, CH_pad)
    cw2_p = jnp.zeros((CH_pad, CH_pad), cw2.dtype).at[:CH, :CH].set(cw2)
    cb2_p = pad_cols(cb2, CH_pad)

    # Final layer: keep only sublane-rounded real output columns (tiny, transposed store).
    O_pad = _round_up(max(output_size, 1), sublane)
    cw3_p = jnp.zeros((CH_pad, O_pad), cw3.dtype).at[:CH, :output_size].set(cw3)
    cb3_p = jnp.zeros((1, O_pad), cb3.dtype).at[:, :output_size].set(cb3)

    cd = compute_dtype
    f32 = jnp.float32
    return (w1_perm.astype(cd), b1_cat.astype(f32),
            w2_bd.astype(cd),  b2_cat.astype(f32),
            wf_p.astype(cd),   bf_p.astype(f32),
            cw2_p.astype(cd),  cb2_p.astype(f32),
            cw3_p.astype(cd),  cb3_p.astype(f32))


# ---------------------------------------------------------------------------
# Forward wrapper.
# ---------------------------------------------------------------------------
def slice_mlp_multinet_forward(x, fused_params, *, output_size):
    """x: (B, n_projections, patch_size, patch_size) float (NCHW)."""
    B, C, P, P2 = x.shape
    assert P == P2

    (w1, b1, w2, b2, wf, bf, cw2, cb2, cw3, cb3) = fused_params
    K = C * P * P2
    assert w1.shape[0] == K, "fused w1 does not match input feature count"
    O_pad = cw3.shape[1]

    # Permutation is folded into w1, so this is a contiguous (layout-free) reshape.
    x_flat = x.reshape(B, K)

    # Batch tiling: large lane-aligned tiles to amortize the ~0.35us/step overhead;
    # keep >=2 grid steps when the batch allows so "parallel" can use v7x's 2nd core.
    B8 = _round_up(B, 8)
    if B8 < 256:
        TB = B8                      # single step; too small to split lane-aligned
    else:
        TB = 512
        while TB > 128 and (B8 // TB < 2 or _round_up(B8, TB) - B8 >= TB // 2):
            TB //= 2
    B_pad = _round_up(B8, TB)
    if B_pad != B:
        # Only a tiny pad when B is not tile-aligned (no pad at all in the aligned case).
        x_flat = jnp.pad(x_flat, ((0, B_pad - B), (0, 0)))
    grid = (B_pad // TB,)

    x_spec = pl.BlockSpec((TB, K), lambda i: (i, 0))
    out_spec = pl.BlockSpec((O_pad, TB), lambda i: (0, i))   # lane-dense transposed slab

    def wspec(a):
        return pl.BlockSpec(a.shape, lambda i: (0, 0))       # VMEM-resident weights

    weights = (w1, b1, w2, b2, wf, bf, cw2, cb2, cw3, cb3)

    # Explicit scoped-VMEM limit sized from the actual footprint (generous headroom),
    # so bigger tiles / realistic widths don't trip the default scoped limit (esp. v5e).
    weight_bytes = sum(int(a.size) * a.dtype.itemsize for a in weights)
    io_bytes = TB * K * x_flat.dtype.itemsize + O_pad * TB * 4
    act_bytes = TB * max(w1.shape[1], cw2.shape[1]) * 4 * 4
    vmem_limit = int(min(max(4 * (weight_bytes + io_bytes + act_bytes), 8 << 20), 32 << 20))

    out = pl.pallas_call(
        _slice_mlp_multinet_kernel,
        out_shape=jax.ShapeDtypeStruct((O_pad, B_pad), jnp.float32),
        grid=grid,
        in_specs=[x_spec] + [wspec(a) for a in weights],
        out_specs=out_spec,
        compiler_params=pltpu.CompilerParams(
            dimension_semantics=("parallel",),
            vmem_limit_bytes=vmem_limit),
    )(x_flat, *weights)

    # Tiny (O_pad, B_pad) slab -> (B, output_size).
    return out[:output_size, :B].T


# ---------------------------------------------------------------------------
# Synthetic parameters + pure-JAX f32 reference (unfused math) for correctness.
# ---------------------------------------------------------------------------
def init_params(key, *, n_projections, patch_size, mlp_output,
                slice_hidden, combine_hidden, output_size):
    in_size = patch_size * n_projections
    concat_size = patch_size * mlp_output

    def dense(k, fan_in, fan_out):
        kw, kb = jax.random.split(k)
        w = jax.random.normal(kw, (fan_in, fan_out), jnp.float32) * (1.0 / jnp.sqrt(fan_in))
        b = jax.random.normal(kb, (1, fan_out), jnp.float32) * 0.01
        return w, b

    keys = jax.random.split(key, 3 * patch_size + 3)

    w1s, b1s, w2s, b2s, w3s, b3s = [], [], [], [], [], []
    for i in range(patch_size):
        w, b = dense(keys[3 * i + 0], in_size, slice_hidden)
        w1s.append(w); b1s.append(b)
        w, b = dense(keys[3 * i + 1], slice_hidden, slice_hidden)
        w2s.append(w); b2s.append(b)
        w, b = dense(keys[3 * i + 2], slice_hidden, mlp_output)
        w3s.append(w); b3s.append(b)

    cw1, cb1 = dense(keys[-3], concat_size, combine_hidden)
    cw2, cb2 = dense(keys[-2], combine_hidden, combine_hidden)
    cw3, cb3 = dense(keys[-1], combine_hidden, output_size)

    stack = lambda xs: jnp.stack(xs, axis=0)
    return (stack(w1s), stack(b1s), stack(w2s), stack(b2s), stack(w3s), stack(b3s),
            cw1, cb1, cw2, cb2, cw3, cb3)


def reference_forward(x, params):
    (w1, b1, w2, b2, w3, b3, cw1, cb1, cw2, cb2, cw3, cb3) = params
    B, C, P, _ = x.shape
    xr = jnp.transpose(x, (0, 2, 1, 3)).reshape(B, P, C * P)
    outs = []
    for i in range(P):
        h = jnp.maximum(xr[:, i] @ w1[i] + b1[i], 0.0)
        h = jnp.maximum(h @ w2[i] + b2[i], 0.0)
        outs.append(h @ w3[i] + b3[i])
    z = jnp.concatenate(outs, axis=-1)
    h = jnp.maximum(z @ cw1 + cb1, 0.0)
    h = jnp.maximum(h @ cw2 + cb2, 0.0)
    return h @ cw3 + cb3


if __name__ == "__main__":
    batch = 8
    n_projections = 4
    patch_size = 4
    mlp_output = 8
    slice_hidden = 32
    combine_hidden = 32
    output_size = 1

    key = jax.random.PRNGKey(0)
    kx, kp = jax.random.split(key)
    x = jax.random.normal(kx, (batch, n_projections, patch_size, patch_size), jnp.float32)

    params = init_params(
        kp,
        n_projections=n_projections,
        patch_size=patch_size,
        mlp_output=mlp_output,
        slice_hidden=slice_hidden,
        combine_hidden=combine_hidden,
        output_size=output_size,
    )
    fused = fuse_params(params, n_projections=n_projections, patch_size=patch_size,
                        output_size=output_size)

    out = slice_mlp_multinet_forward(x, fused, output_size=output_size)
    out = jax.block_until_ready(out)

    ref = reference_forward(x, params)
    assert out.shape == (batch, output_size)
    # Tolerance loosened for bf16 weights/activations (f32 accumulation kept).
    assert jnp.allclose(out, ref, atol=5e-2, rtol=5e-2), "mismatch vs JAX reference"

    print("KERNEL_OK")
</pallas_src>

<mosaic_0001>
module attributes {stable_mosaic.version = 11 : i64} {
  func.func @_slice_mlp_multinet_kernel(%arg0: i32, %arg1: memref<8x64xf32, #tpu.memory_space<vmem>>, %arg2: memref<64x128xbf16, #tpu.memory_space<vmem>>, %arg3: memref<1x128xf32, #tpu.memory_space<vmem>>, %arg4: memref<128x128xbf16, #tpu.memory_space<vmem>>, %arg5: memref<1x128xf32, #tpu.memory_space<vmem>>, %arg6: memref<128x128xbf16, #tpu.memory_space<vmem>>, %arg7: memref<1x128xf32, #tpu.memory_space<vmem>>, %arg8: memref<128x128xbf16, #tpu.memory_space<vmem>>, %arg9: memref<1x128xf32, #tpu.memory_space<vmem>>, %arg10: memref<128x8xbf16, #tpu.memory_space<vmem>>, %arg11: memref<1x8xf32, #tpu.memory_space<vmem>>, %arg12: memref<8x8xf32, #tpu.memory_space<vmem>>) attributes {dimension_semantics = [#tpu.dimension_semantics<parallel>], iteration_bounds = array<i64: 1>, scalar_prefetch = 0 : i64, scratch_operands = 0 : i64, tpu.core_type = #tpu.core_type<tc>, window_params = [{transform_indices = @transform_0, window_bounds = array<i64: 8, 64>}, {pipeline_mode = #tpu.pipeline_mode<synchronous>, transform_indices = @transform_1, window_bounds = array<i64: 64, 128>}, {pipeline_mode = #tpu.pipeline_mode<synchronous>, transform_indices = @transform_2, window_bounds = array<i64: 1, 128>}, {pipeline_mode = #tpu.pipeline_mode<synchronous>, transform_indices = @transform_3, window_bounds = array<i64: 128, 128>}, {pipeline_mode = #tpu.pipeline_mode<synchronous>, transform_indices = @transform_4, window_bounds = array<i64: 1, 128>}, {pipeline_mode = #tpu.pipeline_mode<synchronous>, transform_indices = @transform_5, window_bounds = array<i64: 128, 128>}, {pipeline_mode = #tpu.pipeline_mode<synchronous>, transform_indices = @transform_6, window_bounds = array<i64: 1, 128>}, {pipeline_mode = #tpu.pipeline_mode<synchronous>, transform_indices = @transform_7, window_bounds = array<i64: 128, 128>}, {pipeline_mode = #tpu.pipeline_mode<synchronous>, transform_indices = @transform_8, window_bounds = array<i64: 1, 128>}, {pipeline_mode = #tpu.pipeline_mode<synchronous>, transform_indices = @transform_9, window_bounds = array<i64: 128, 8>}, {pipeline_mode = #tpu.pipeline_mode<synchronous>, transform_indices = @transform_10, window_bounds = array<i64: 1, 8>}, {transform_indices = @transform_11, window_bounds = array<i64: 8, 8>}]} {
    %c0 = arith.constant 0 : index
    %c0_0 = arith.constant 0 : index
    %0 = vector.load %arg1[%c0, %c0_0] : memref<8x64xf32, #tpu.memory_space<vmem>>, vector<8x64xf32>
    %1 = arith.truncf %0 : vector<8x64xf32> to vector<8x64xbf16>
    %c0_1 = arith.constant 0 : index
    %c0_2 = arith.constant 0 : index
    %2 = vector.load %arg2[%c0_1, %c0_2] : memref<64x128xbf16, #tpu.memory_space<vmem>>, vector<64x128xbf16>
    %cst = arith.constant dense<0.000000e+00> : vector<8x128xf32>
    %3 = tpu.matmul %1, %2, %cst {dimension_numbers = #tpu.dot_dimension_numbers<[1], [0], [0], [1], [0, 0, 1, 1], [], []>} : vector<8x64xbf16>, vector<64x128xbf16>, vector<8x128xf32> -> vector<8x128xf32>
    %c0_3 = arith.constant 0 : index
    %c0_4 = arith.constant 0 : index
    %4 = vector.load %arg3[%c0_3, %c0_4] : memref<1x128xf32, #tpu.memory_space<vmem>>, vector<1x128xf32>
    %5 = vector.broadcast %4 : vector<1x128xf32> to vector<8x128xf32>
    %6 = arith.addf %3, %5 : vector<8x128xf32>
    %cst_5 = arith.constant 0.000000e+00 : f32
    %7 = vector.broadcast %cst_5 : f32 to vector<8x128xf32>
    %8 = arith.maximumf %6, %7 : vector<8x128xf32>
    %9 = arith.truncf %8 : vector<8x128xf32> to vector<8x128xbf16>
    %c0_6 = arith.constant 0 : index
    %c0_7 = arith.constant 0 : index
    %10 = vector.load %arg4[%c0_6, %c0_7] : memref<128x128xbf16, #tpu.memory_space<vmem>>, vector<128x128xbf16>
    %cst_8 = arith.constant dense<0.000000e+00> : vector<8x128xf32>
    %11 = tpu.matmul %9, %10, %cst_8 {dimension_numbers = #tpu.dot_dimension_numbers<[1], [0], [0], [1], [0, 0, 1, 1], [], []>} : vector<8x128xbf16>, vector<128x128xbf16>, vector<8x128xf32> -> vector<8x128xf32>
    %c0_9 = arith.constant 0 : index
    %c0_10 = arith.constant 0 : index
    %12 = vector.load %arg5[%c0_9, %c0_10] : memref<1x128xf32, #tpu.memory_space<vmem>>, vector<1x128xf32>
    %13 = vector.broadcast %12 : vector<1x128xf32> to vector<8x128xf32>
    %14 = arith.addf %11, %13 : vector<8x128xf32>
    %cst_11 = arith.constant 0.000000e+00 : f32
    %15 = vector.broadcast %cst_11 : f32 to vector<8x128xf32>
    %16 = arith.maximumf %14, %15 : vector<8x128xf32>
    %17 = arith.truncf %16 : vector<8x128xf32> to vector<8x128xbf16>
    %c0_12 = arith.constant 0 : index
    %c0_13 = arith.constant 0 : index
    %18 = vector.load %arg6[%c0_12, %c0_13] : memref<128x128xbf16, #tpu.memory_space<vmem>>, vector<128x128xbf16>
    %cst_14 = arith.constant dense<0.000000e+00> : vector<8x128xf32>
    %19 = tpu.matmul %17, %18, %cst_14 {dimension_numbers = #tpu.dot_dimension_numbers<[1], [0], [0], [1], [0, 0, 1, 1], [], []>} : vector<8x128xbf16>, vector<128x128xbf16>, vector<8x128xf32> -> vector<8x128xf32>
    %c0_15 = arith.constant 0 : index
    %c0_16 = arith.constant 0 : index
    %20 = vector.load %arg7[%c0_15, %c0_16] : memref<1x128xf32, #tpu.memory_space<vmem>>, vector<1x128xf32>
    %21 = vector.broadcast %20 : vector<1x128xf32> to vector<8x128xf32>
    %22 = arith.addf %19, %21 : vector<8x128xf32>
    %cst_17 = arith.constant 0.000000e+00 : f32
    %23 = vector.broadcast %cst_17 : f32 to vector<8x128xf32>
    %24 = arith.maximumf %22, %23 : vector<8x128xf32>
    %25 = arith.truncf %24 : vector<8x128xf32> to vector<8x128xbf16>
    %c0_18 = arith.constant 0 : index
    %c0_19 = arith.constant 0 : index
    %26 = vector.load %arg8[%c0_18, %c0_19] : memref<128x128xbf16, #tpu.memory_space<vmem>>, vector<128x128xbf16>
    %cst_20 = arith.constant dense<0.000000e+00> : vector<8x128xf32>
    %27 = tpu.matmul %25, %26, %cst_20 {dimension_numbers = #tpu.dot_dimension_numbers<[1], [0], [0], [1], [0, 0, 1, 1], [], []>} : vector<8x128xbf16>, vector<128x128xbf16>, vector<8x128xf32> -> vector<8x128xf32>
    %c0_21 = arith.constant 0 : index
    %c0_22 = arith.constant 0 : index
    %28 = vector.load %arg9[%c0_21, %c0_22] : memref<1x128xf32, #tpu.memory_space<vmem>>, vector<1x128xf32>
    %29 = vector.broadcast %28 : vector<1x128xf32> to vector<8x128xf32>
    %30 = arith.addf %27, %29 : vector<8x128xf32>
    %cst_23 = arith.constant 0.000000e+00 : f32
    %31 = vector.broadcast %cst_23 : f32 to vector<8x128xf32>
    %32 = arith.maximumf %30, %31 : vector<8x128xf32>
    %33 = arith.truncf %32 : vector<8x128xf32> to vector<8x128xbf16>
    %c0_24 = arith.constant 0 : index
    %c0_25 = arith.constant 0 : index
    %34 = vector.load %arg10[%c0_24, %c0_25] : memref<128x8xbf16, #tpu.memory_space<vmem>>, vector<128x8xbf16>
    %cst_26 = arith.constant dense<0.000000e+00> : vector<8x8xf32>
    %35 = tpu.matmul %33, %34, %cst_26 {dimension_numbers = #tpu.dot_dimension_numbers<[1], [0], [0], [1], [0, 0, 1, 1], [], []>} : vector<8x128xbf16>, vector<128x8xbf16>, vector<8x8xf32> -> vector<8x8xf32>
    %c0_27 = arith.constant 0 : index
    %c0_28 = arith.constant 0 : index
    %36 = vector.load %arg11[%c0_27, %c0_28] : memref<1x8xf32, #tpu.memory_space<vmem>>, vector<1x8xf32>
    %37 = vector.broadcast %36 : vector<1x8xf32> to vector<8x8xf32>
    %38 = arith.addf %35, %37 : vector<8x8xf32>
    %39 = tpu.transpose %38, [1, 0] : vector<8x8xf32> -> vector<8x8xf32>
    %c0_29 = arith.constant 0 : index
    %c0_30 = arith.constant 0 : index
    %40 = vector.load %arg12[%c0_29, %c0_30] : memref<8x8xf32, #tpu.memory_space<vmem>>, vector<8x8xf32>
    tpu.vector_store %arg12[%c0_29, %c0_30], %39 {strides = array<i32>} : memref<8x8xf32, #tpu.memory_space<vmem>>, vector<8x8xf32>,
    return
  }
  func.func @transform_0(%arg0: i32) -> (i32, i32) {
    %c0_i32 = arith.constant 0 : i32
    %c0_i32_0 = arith.constant 0 : i32
    return %arg0, %c0_i32 : i32, i32
  }
  func.func @transform_1(%arg0: i32) -> (i32, i32) {
    %c0_i32 = arith.constant 0 : i32
    %c0_i32_0 = arith.constant 0 : i32
    %c0_i32_1 = arith.constant 0 : i32
    return %c0_i32, %c0_i32_0 : i32, i32
  }
  func.func @transform_2(%arg0: i32) -> (i32, i32) {
    %c0_i32 = arith.constant 0 : i32
    %c0_i32_0 = arith.constant 0 : i32
    %c0_i32_1 = arith.constant 0 : i32
    return %c0_i32, %c0_i32_0 : i32, i32
  }
  func.func @transform_3(%arg0: i32) -> (i32, i32) {
    %c0_i32 = arith.constant 0 : i32
    %c0_i32_0 = arith.constant 0 : i32
    %c0_i32_1 = arith.constant 0 : i32
    return %c0_i32, %c0_i32_0 : i32, i32
  }
  func.func @transform_4(%arg0: i32) -> (i32, i32) {
    %c0_i32 = arith.constant 0 : i32
    %c0_i32_0 = arith.constant 0 : i32
    %c0_i32_1 = arith.constant 0 : i32
    return %c0_i32, %c0_i32_0 : i32, i32
  }
  func.func @transform_5(%arg0: i32) -> (i32, i32) {
    %c0_i32 = arith.constant 0 : i32
    %c0_i32_0 = arith.constant 0 : i32
    %c0_i32_1 = arith.constant 0 : i32
    return %c0_i32, %c0_i32_0 : i32, i32
  }
  func.func @transform_6(%arg0: i32) -> (i32, i32) {
    %c0_i32 = arith.constant 0 : i32
    %c0_i32_0 = arith.constant 0 : i32
    %c0_i32_1 = arith.constant 0 : i32
    return %c0_i32, %c0_i32_0 : i32, i32
  }
  func.func @transform_7(%arg0: i32) -> (i32, i32) {
    %c0_i32 = arith.constant 0 : i32
    %c0_i32_0 = arith.constant 0 : i32
    %c0_i32_1 = arith.constant 0 : i32
    return %c0_i32, %c0_i32_0 : i32, i32
  }
  func.func @transform_8(%arg0: i32) -> (i32, i32) {
    %c0_i32 = arith.constant 0 : i32
    %c0_i32_0 = arith.constant 0 : i32
    %c0_i32_1 = arith.constant 0 : i32
    return %c0_i32, %c0_i32_0 : i32, i32
  }
  func.func @transform_9(%arg0: i32) -> (i32, i32) {
    %c0_i32 = arith.constant 0 : i32
    %c0_i32_0 = arith.constant 0 : i32
    %c0_i32_1 = arith.constant 0 : i32
    return %c0_i32, %c0_i32_0 : i32, i32
  }
  func.func @transform_10(%arg0: i32) -> (i32, i32) {
    %c0_i32 = arith.constant 0 : i32
    %c0_i32_0 = arith.constant 0 : i32
    %c0_i32_1 = arith.constant 0 : i32
    return %c0_i32, %c0_i32_0 : i32, i32
  }
  func.func @transform_11(%arg0: i32) -> (i32, i32) {
    %c0_i32 = arith.constant 0 : i32
    %c0_i32_0 = arith.constant 0 : i32
    return %c0_i32, %arg0 : i32, i32
  }
}

</mosaic_0001>

<llo_original>
// kernel: tpu_custom_call.1
$region0: #{tpu_custom_call.1}
  #allocation0 [shape = 'u32[]', space=smem, size = 0x4, offset = 0x4, fixed_abs, tag = 'smem constant byte address 0x4 - core index']
  #allocation1 [shape = 'u32[144,128]{1,0:T(1,128)}', space=vmem, size = 0x12000, scoped, tag = 'internal scratch']
  %s0 = inlined_call_operand.vmem [shape: f32[8,64], index: 0, kind: input, shape index: {}]
  %s1 = inlined_call_operand.hbm [shape: bf16[64,128], index: 1, kind: input, shape index: {}]
  %s2 = inlined_call_operand.vmem [shape: f32[1,128], index: 2, kind: input, shape index: {}]
  %s3 = inlined_call_operand.vmem [shape: bf16[128,128], index: 3, kind: input, shape index: {}]
  %s4 = inlined_call_operand.vmem [shape: f32[1,128], index: 4, kind: input, shape index: {}]
  %s5 = inlined_call_operand.hbm [shape: bf16[128,128], index: 5, kind: input, shape index: {}]
  %s6 = inlined_call_operand.vmem [shape: f32[1,128], index: 6, kind: input, shape index: {}]
  %s7 = inlined_call_operand.hbm [shape: bf16[128,128], index: 7, kind: input, shape index: {}]
  %s8 = inlined_call_operand.vmem [shape: f32[1,128], index: 8, kind: input, shape index: {}]
  %s9 = inlined_call_operand.vmem [shape: bf16[128,8], index: 9, kind: input, shape index: {}]
  %s10 = inlined_call_operand.vmem [shape: f32[1,8], index: 10, kind: input, shape index: {}]
  %s11 = inlined_call_operand.hbm [shape: f32[8,8], index: 11, kind: output, shape index: {}]
  %s12 = sld [smem:[#allocation0]]
  $region66: #{tpu_custom_call.1} parent=0
    _
  %s14 = ssub.s32 1, %s12
  %s15 = scalar_select 0, %s14, %s12
  $region1: #{tpu_custom_call.1} parent=0
    #allocation2 [shape = 'u8[16384]{0}', space=vmem, size = 0x4000, scoped, tag = 'input window, operand 1, single buffered']
    #allocation3 [shape = 's32[1]{0}', space=sflag, size = 0x4, scoped, tag = 'scoped memory for tpu_custom_call.1']
    #allocation4 [shape = 's32[1]{0}', space=sflag, size = 0x4, scoped, tag = 'scoped memory for tpu_custom_call.1']
    #allocation5 [shape = 'u8[32768]{0}', space=vmem, size = 0x8000, scoped, tag = 'input window, operand 5, single buffered']
    #allocation6 [shape = 's32[1]{0}', space=sflag, size = 0x4, scoped, tag = 'scoped memory for tpu_custom_call.1']
    #allocation7 [shape = 'u8[32768]{0}', space=vmem, size = 0x8000, scoped, tag = 'input window, operand 7, single buffered']
    #allocation8 [shape = 'u8[4096]{0}', space=vmem, size = 0x1000, scoped, tag = 'output window, operand 0, single buffered']
    %16 = vsyncpa [#allocation3], 0
    %17 = vsyncpa [#allocation6], 0
    %18 = vsyncpa [#allocation4], 0
    // Predicated region
    $region2: #{tpu_custom_call.1} parent=1 // pred_check
      _
    $region3: #{tpu_custom_call.1} parent=1 // pred_check_branch
      %20 = sbr.rel (0) target = $region5
    $region4: #{tpu_custom_call.1} parent=1 // pred_region
      _
    $region5: #{tpu_custom_call.1} parent=1 // pred_fallthru
      _
    // Predicated region
    $region6: #{tpu_custom_call.1} parent=1 // pred_check
      _
    $region7: #{tpu_custom_call.1} parent=1 // pred_check_branch
      %22 = sbr.rel (0) target = $region9
    $region8: #{tpu_custom_call.1} parent=1 // pred_region
      %s24 = ssub.s32 512, 512
      %25 = vsyncadd [#allocation3], %s24
      %s26 = sshll.u32 [#allocation2], 4
      %s27 = int_to_ptr.vmem [resolvable:$true] %s26
      %32 = dma.hbm_to_vmem [thread:$0]  %s1, 512, %s27, [#allocation3], 64, 64, 4
    $region9: #{tpu_custom_call.1} parent=1 // pred_fallthru
      _
    // Predicated region
    $region10: #{tpu_custom_call.1} parent=1 // pred_check
      _
    $region11: #{tpu_custom_call.1} parent=1 // pred_check_branch
      %34 = sbr.rel (0) target = $region13
    $region12: #{tpu_custom_call.1} parent=1 // pred_region
      _
    $region13: #{tpu_custom_call.1} parent=1 // pred_fallthru
      _
    // Predicated region
    $region14: #{tpu_custom_call.1} parent=1 // pred_check
      _
    $region15: #{tpu_custom_call.1} parent=1 // pred_check_branch
      %36 = sbr.rel (0) target = $region17
    $region16: #{tpu_custom_call.1} parent=1 // pred_region
      _
    $region17: #{tpu_custom_call.1} parent=1 // pred_fallthru
      _
    // Predicated region
    $region18: #{tpu_custom_call.1} parent=1 // pred_check
      _
    $region19: #{tpu_custom_call.1} parent=1 // pred_check_branch
      %38 = sbr.rel (0) target = $region21
    $region20: #{tpu_custom_call.1} parent=1 // pred_region
      _
    $region21: #{tpu_custom_call.1} parent=1 // pred_fallthru
      _
    // Predicated region
    $region22: #{tpu_custom_call.1} parent=1 // pred_check
      _
    $region23: #{tpu_custom_call.1} parent=1 // pred_check_branch
      %40 = sbr.rel (0) target = $region25
    $region24: #{tpu_custom_call.1} parent=1 // pred_region
      %s42 = ssub.s32 1024, 1024
      %43 = vsyncadd [#allocation6], %s42
      %s44 = sshll.u32 [#allocation5], 4
      %s45 = int_to_ptr.vmem [resolvable:$true] %s44
      %50 = dma.hbm_to_vmem [thread:$0]  %s5, 1024, %s45, [#allocation6], 64, 64, 4
    $region25: #{tpu_custom_call.1} parent=1 // pred_fallthru
      _
    // Predicated region
    $region26: #{tpu_custom_call.1} parent=1 // pred_check
      _
    $region27: #{tpu_custom_call.1} parent=1 // pred_check_branch
      %52 = sbr.rel (0) target = $region29
    $region28: #{tpu_custom_call.1} parent=1 // pred_region
      _
    $region29: #{tpu_custom_call.1} parent=1 // pred_fallthru
      _
    // Predicated region
    $region30: #{tpu_custom_call.1} parent=1 // pred_check
      _
    $region31: #{tpu_custom_call.1} parent=1 // pred_check_branch
      %54 = sbr.rel (0) target = $region33
    $region32: #{tpu_custom_call.1} parent=1 // pred_region
      %s56 = ssub.s32 1024, 1024
      %57 = vsyncadd [#allocation6], %s56
      %s58 = sshll.u32 [#allocation7], 4
      %s59 = int_to_ptr.vmem [resolvable:$true] %s58
      %64 = dma.hbm_to_vmem [thread:$0]  %s7, 1024, %s59, [#allocation6], 64, 64, 4
    $region33: #{tpu_custom_call.1} parent=1 // pred_fallthru
      _
    // Predicated region
    $region34: #{tpu_custom_call.1} parent=1 // pred_check
      _
    $region35: #{tpu_custom_call.1} parent=1 // pred_check_branch
      %66 = sbr.rel (0) target = $region37
    $region36: #{tpu_custom_call.1} parent=1 // pred_region
      _
    $region37: #{tpu_custom_call.1} parent=1 // pred_fallthru
      _
    // Predicated region
    $region38: #{tpu_custom_call.1} parent=1 // pred_check
      _
    $region39: #{tpu_custom_call.1} parent=1 // pred_check_branch
      %68 = sbr.rel (0) target = $region41
    $region40: #{tpu_custom_call.1} parent=1 // pred_region
      _
    $region41: #{tpu_custom_call.1} parent=1 // pred_fallthru
      _
    // Predicated region
    $region42: #{tpu_custom_call.1} parent=1 // pred_check
      _
    $region43: #{tpu_custom_call.1} parent=1 // pred_check_branch
      %70 = sbr.rel (0) target = $region45
    $region44: #{tpu_custom_call.1} parent=1 // pred_region
      _
    $region45: #{tpu_custom_call.1} parent=1 // pred_fallthru
      _
    // Predicated region
    $region46: #{tpu_custom_call.1} parent=1 // pred_check
      _
    $region47: #{tpu_custom_call.1} parent=1 // pred_check_branch
      %72 = sbr.rel (0) target = $region49
    $region48: #{tpu_custom_call.1} parent=1 // pred_region
      %73 = dma.done [#allocation3], 512
    $region49: #{tpu_custom_call.1} parent=1 // pred_fallthru
      _
    // Predicated region
    $region50: #{tpu_custom_call.1} parent=1 // pred_check
      _
    $region51: #{tpu_custom_call.1} parent=1 // pred_check_branch
      %75 = sbr.rel (0) target = $region53
    $region52: #{tpu_custom_call.1} parent=1 // pred_region
      %76 = dma.done [#allocation6], 1024
    $region53: #{tpu_custom_call.1} parent=1 // pred_fallthru
      _
    // Predicated region
    $region54: #{tpu_custom_call.1} parent=1 // pred_check
      _
    $region55: #{tpu_custom_call.1} parent=1 // pred_check_branch
      %78 = sbr.rel (0) target = $region57
    $region56: #{tpu_custom_call.1} parent=1 // pred_region
      %79 = dma.done [#allocation6], 1024
    $region57: #{tpu_custom_call.1} parent=1 // pred_fallthru
      _
    %v81 = vld [vmem:[%s0] sm:$0xff]
    %v82 = vpack.c.bf16 %v81, %v81
    %v83 = vld [vmem:[#allocation2] sm:$0xf]
    %v84 = vld [vmem:[#allocation2 + $0x4] sm:$0xf]
    %v85 = vld [vmem:[#allocation2 + $0x8] sm:$0xf]
    %v86 = vld [vmem:[#allocation2 + $0xc] sm:$0xf]
    %v87 = vld [vmem:[#allocation2 + $0x10] sm:$0xf]
    %v88 = vld [vmem:[#allocation2 + $0x14] sm:$0xf]
    %v89 = vld [vmem:[#allocation2 + $0x18] sm:$0xf]
    %v90 = vld [vmem:[#allocation2 + $0x1c] sm:$0xf]
    %v91 = vld [vmem:[%s2] sm:$0x1]
    %v93 = vlaneseq
    %v94 = vshrl.u32 %v93, 7
    %v95 = vsub.s32 0, %v94
    %v96 = vrot.slane %v91, %v95
    %v106 = vunpack.c.l.b16 %v83
    %v107 = vunpack.c.l.b16 %v84
    %v108 = vunpack.c.l.b16 %v85
    %v109 = vunpack.c.l.b16 %v86
    %v110 = vunpack.c.l.b16 %v87
    %v111 = vunpack.c.l.b16 %v88
    %v112 = vunpack.c.l.b16 %v89
    %v113 = vunpack.c.l.b16 %v90
    %v114 = vpack.c.b16 %v107, %v106
    %v115 = vpack.c.b16 %v109, %v108
    %v116 = vpack.c.b16 %v111, %v110
    %v117 = vpack.c.b16 %v113, %v112
    %vm122 = vcmask 523264
    %v124 = vsel %vm122, %v82, 0
    %126 = vmatprep.subr.bf16.mxu0 0
    %127 = vmatpush1.bf16.msra.mxu0 %v114
    %128 = vmatprep.subr.bf16.mxu0 0
    %129 = vmatpush1.bf16.msra.mxu0 %v115
    %130 = vmatprep.subr.bf16.mxu0 0
    %131 = vmatpush1.bf16.msra.mxu0 %v116
    %132 = vmatprep.subr.bf16.mxu0 0
    %133 = vmatpush1.bf16.msra.mxu0 %v117
    %134 = vmatprep.subr.bf16.mxu0 0
    %135 = vmatpush1.bf16.msra.mxu0 0
    %136 = vmatprep.subr.bf16.mxu0 0
    %137 = vmatpush1.bf16.msra.mxu0 0
    %138 = vmatprep.subr.bf16.mxu0 0
    %139 = vmatpush1.bf16.msra.mxu0 0
    %140 = vmatprep.subr.bf16.mxu0 0
    %141 = vmatpush1.bf16.msra.mxu0 0
    %142 = vmatprep.subr.bf16.mxu0 0
    %143 = vmatpush1.bf16.msra.mxu0 0
    %144 = vmatprep.subr.bf16.mxu0 0
    %145 = vmatpush1.bf16.msra.mxu0 0
    %146 = vmatprep.subr.bf16.mxu0 0
    %147 = vmatpush1.bf16.msra.mxu0 0
    %148 = vmatprep.subr.bf16.mxu0 0
    %149 = vmatpush1.bf16.msra.mxu0 0
    %150 = vmatprep.subr.bf16.mxu0 0
    %151 = vmatpush1.bf16.msra.mxu0 0
    %152 = vmatprep.subr.bf16.mxu0 0
    %153 = vmatpush1.bf16.msra.mxu0 0
    %154 = vmatprep.subr.bf16.mxu0 0
    %155 = vmatpush1.bf16.msra.mxu0 0
    %156 = vmatprep.subr.bf16.mxu0 0
    %157 = vmatpush1.bf16.msra.mxu0 0
    %158 = vmatprep.mubr.bf16.mxu0 0
    %159 = vmatmul.mubr.bf16.gmra.mrb[0].mxu0 %v124
    %v160 = vpop.f32.mrb[0].mxu0
    %v161 = vadd.f32 %v96, %v160
    %v162 = vpop.f32.mrb[0].mxu0
    %v163 = vpop.f32.mrb[0].mxu0
    %v164 = vpop.f32.mrb[0].mxu0
    %165 = vdwg.mxu0
    %v166 = vmax.f32 %v161, 0.0
    %v167 = vpack.c.bf16 %v166, %v166
    %v168 = vld [vmem:[%s3] sm:$0xf]
    %v169 = vld [vmem:[%s3 + $0x4] sm:$0xf]
    %v170 = vld [vmem:[%s3 + $0x8] sm:$0xf]
    %v171 = vld [vmem:[%s3 + $0xc] sm:$0xf]
    %v172 = vld [vmem:[%s3 + $0x10] sm:$0xf]
    %v173 = vld [vmem:[%s3 + $0x14] sm:$0xf]
    %v174 = vld [vmem:[%s3 + $0x18] sm:$0xf]
    %v175 = vld [vmem:[%s3 + $0x1c] sm:$0xf]
    %v176 = vld [vmem:[%s3 + $0x20] sm:$0xf]
    %v177 = vld [vmem:[%s3 + $0x24] sm:$0xf]
    %v178 = vld [vmem:[%s3 + $0x28] sm:$0xf]
    %v179 = vld [vmem:[%s3 + $0x2c] sm:$0xf]
    %v180 = vld [vmem:[%s3 + $0x30] sm:$0xf]
    %v181 = vld [vmem:[%s3 + $0x34] sm:$0xf]
    %v182 = vld [vmem:[%s3 + $0x38] sm:$0xf]
    %v183 = vld [vmem:[%s3 + $0x3c] sm:$0xf]
    %v184 = vld [vmem:[%s4] sm:$0x1]
    %v186 = vlaneseq
    %v187 = vshrl.u32 %v186, 7
    %v188 = vsub.s32 0, %v187
    %v189 = vrot.slane %v184, %v188
    %v207 = vunpack.c.l.b16 %v168
    %v208 = vunpack.c.l.b16 %v169
    %v209 = vunpack.c.l.b16 %v170
    %v210 = vunpack.c.l.b16 %v171
    %v211 = vunpack.c.l.b16 %v172
    %v212 = vunpack.c.l.b16 %v173
    %v213 = vunpack.c.l.b16 %v174
    %v214 = vunpack.c.l.b16 %v175
    %v215 = vunpack.c.l.b16 %v176
    %v216 = vunpack.c.l.b16 %v177
    %v217 = vunpack.c.l.b16 %v178
    %v218 = vunpack.c.l.b16 %v179
    %v219 = vunpack.c.l.b16 %v180
    %v220 = vunpack.c.l.b16 %v181
    %v221 = vunpack.c.l.b16 %v182
    %v222 = vunpack.c.l.b16 %v183
    %v223 = vpack.c.b16 %v208, %v207
    %v224 = vpack.c.b16 %v210, %v209
    %v225 = vpack.c.b16 %v212, %v211
    %v226 = vpack.c.b16 %v214, %v213
    %v227 = vpack.c.b16 %v216, %v215
    %v228 = vpack.c.b16 %v218, %v217
    %v229 = vpack.c.b16 %v220, %v219
    %v230 = vpack.c.b16 %v222, %v221
    %239 = vmatprep.subr.bf16.mxu0 0
    %240 = vmatpush1.bf16.msra.mxu0 %v223
    %241 = vmatprep.subr.bf16.mxu0 0
    %242 = vmatpush1.bf16.msra.mxu0 %v224
    %243 = vmatprep.subr.bf16.mxu0 0
    %244 = vmatpush1.bf16.msra.mxu0 %v225
    %245 = vmatprep.subr.bf16.mxu0 0
    %246 = vmatpush1.bf16.msra.mxu0 %v226
    %247 = vmatprep.subr.bf16.mxu0 0
    %248 = vmatpush1.bf16.msra.mxu0 %v227
    %249 = vmatprep.subr.bf16.mxu0 0
    %250 = vmatpush1.bf16.msra.mxu0 %v228
    %251 = vmatprep.subr.bf16.mxu0 0
    %252 = vmatpush1.bf16.msra.mxu0 %v229
    %253 = vmatprep.subr.bf16.mxu0 0
    %254 = vmatpush1.bf16.msra.mxu0 %v230
    %255 = vmatprep.subr.bf16.mxu0 0
    %256 = vmatpush1.bf16.msra.mxu0 0
    %257 = vmatprep.subr.bf16.mxu0 0
    %258 = vmatpush1.bf16.msra.mxu0 0
    %259 = vmatprep.subr.bf16.mxu0 0
    %260 = vmatpush1.bf16.msra.mxu0 0
    %261 = vmatprep.subr.bf16.mxu0 0
    %262 = vmatpush1.bf16.msra.mxu0 0
    %263 = vmatprep.subr.bf16.mxu0 0
    %264 = vmatpush1.bf16.msra.mxu0 0
    %265 = vmatprep.subr.bf16.mxu0 0
    %266 = vmatpush1.bf16.msra.mxu0 0
    %267 = vmatprep.subr.bf16.mxu0 0
    %268 = vmatpush1.bf16.msra.mxu0 0
    %269 = vmatprep.subr.bf16.mxu0 0
    %270 = vmatpush1.bf16.msra.mxu0 0
    %271 = vmatprep.mubr.bf16.mxu0 0
    %272 = vmatmul.mubr.bf16.gmra.mrb[0].mxu0 %v167
    %v273 = vpop.f32.mrb[0].mxu0
    %v274 = vadd.f32 %v189, %v273
    %v275 = vpop.f32.mrb[0].mxu0
    %v276 = vpop.f32.mrb[0].mxu0
    %v277 = vpop.f32.mrb[0].mxu0
    %278 = vdwg.mxu0
    %v279 = vmax.f32 %v274, 0.0
    %v280 = vpack.c.bf16 %v279, %v279
    %v281 = vld [vmem:[#allocation5] sm:$0xf]
    %v282 = vld [vmem:[#allocation5 + $0x4] sm:$0xf]
    %v283 = vld [vmem:[#allocation5 + $0x8] sm:$0xf]
    %v284 = vld [vmem:[#allocation5 + $0xc] sm:$0xf]
    %v285 = vld [vmem:[#allocation5 + $0x10] sm:$0xf]
    %v286 = vld [vmem:[#allocation5 + $0x14] sm:$0xf]
    %v287 = vld [vmem:[#allocation5 + $0x18] sm:$0xf]
    %v288 = vld [vmem:[#allocation5 + $0x1c] sm:$0xf]
    %v289 = vld [vmem:[#allocation5 + $0x20] sm:$0xf]
    %v290 = vld [vmem:[#allocation5 + $0x24] sm:$0xf]
    %v291 = vld [vmem:[#allocation5 + $0x28] sm:$0xf]
    %v292 = vld [vmem:[#allocation5 + $0x2c] sm:$0xf]
    %v293 = vld [vmem:[#allocation5 + $0x30] sm:$0xf]
    %v294 = vld [vmem:[#allocation5 + $0x34] sm:$0xf]
    %v295 = vld [vmem:[#allocation5 + $0x38] sm:$0xf]
    %v296 = vld [vmem:[#allocation5 + $0x3c] sm:$0xf]
    %v297 = vld [vmem:[%s6] sm:$0x1]
    %v299 = vlaneseq
    %v300 = vshrl.u32 %v299, 7
    %v301 = vsub.s32 0, %v300
    %v302 = vrot.slane %v297, %v301
    %v320 = vunpack.c.l.b16 %v281
    %v321 = vunpack.c.l.b16 %v282
    %v322 = vunpack.c.l.b16 %v283
    %v323 = vunpack.c.l.b16 %v284
    %v324 = vunpack.c.l.b16 %v285
    %v325 = vunpack.c.l.b16 %v286
    %v326 = vunpack.c.l.b16 %v287
    %v327 = vunpack.c.l.b16 %v288
    %v328 = vunpack.c.l.b16 %v289
    %v329 = vunpack.c.l.b16 %v290
    %v330 = vunpack.c.l.b16 %v291
    %v331 = vunpack.c.l.b16 %v292
    %v332 = vunpack.c.l.b16 %v293
    %v333 = vunpack.c.l.b16 %v294
    %v334 = vunpack.c.l.b16 %v295
    %v335 = vunpack.c.l.b16 %v296
    %v336 = vpack.c.b16 %v321, %v320
    %v337 = vpack.c.b16 %v323, %v322
    %v338 = vpack.c.b16 %v325, %v324
    %v339 = vpack.c.b16 %v327, %v326
    %v340 = vpack.c.b16 %v329, %v328
    %v341 = vpack.c.b16 %v331, %v330
    %v342 = vpack.c.b16 %v333, %v332
    %v343 = vpack.c.b16 %v335, %v334
    %352 = vmatprep.subr.bf16.mxu0 0
    %353 = vmatpush1.bf16.msra.mxu0 %v336
    %354 = vmatprep.subr.bf16.mxu0 0
    %355 = vmatpush1.bf16.msra.mxu0 %v337
    %356 = vmatprep.subr.bf16.mxu0 0
    %357 = vmatpush1.bf16.msra.mxu0 %v338
    %358 = vmatprep.subr.bf16.mxu0 0
    %359 = vmatpush1.bf16.msra.mxu0 %v339
    %360 = vmatprep.subr.bf16.mxu0 0
    %361 = vmatpush1.bf16.msra.mxu0 %v340
    %362 = vmatprep.subr.bf16.mxu0 0
    %363 = vmatpush1.bf16.msra.mxu0 %v341
    %364 = vmatprep.subr.bf16.mxu0 0
    %365 = vmatpush1.bf16.msra.mxu0 %v342
    %366 = vmatprep.subr.bf16.mxu0 0
    %367 = vmatpush1.bf16.msra.mxu0 %v343
    %368 = vmatprep.subr.bf16.mxu0 0
    %369 = vmatpush1.bf16.msra.mxu0 0
    %370 = vmatprep.subr.bf16.mxu0 0
    %371 = vmatpush1.bf16.msra.mxu0 0
    %372 = vmatprep.subr.bf16.mxu0 0
    %373 = vmatpush1.bf16.msra.mxu0 0
    %374 = vmatprep.subr.bf16.mxu0 0
    %375 = vmatpush1.bf16.msra.mxu0 0
    %376 = vmatprep.subr.bf16.mxu0 0
    %377 = vmatpush1.bf16.msra.mxu0 0
    %378 = vmatprep.subr.bf16.mxu0 0
    %379 = vmatpush1.bf16.msra.mxu0 0
    %380 = vmatprep.subr.bf16.mxu0 0
    %381 = vmatpush1.bf16.msra.mxu0 0
    %382 = vmatprep.subr.bf16.mxu0 0
    %383 = vmatpush1.bf16.msra.mxu0 0
    %384 = vmatprep.mubr.bf16.mxu0 0
    %385 = vmatmul.mubr.bf16.gmra.mrb[0].mxu0 %v280
    %v386 = vpop.f32.mrb[0].mxu0
    %v387 = vadd.f32 %v302, %v386
    %v388 = vpop.f32.mrb[0].mxu0
    %v389 = vpop.f32.mrb[0].mxu0
    %v390 = vpop.f32.mrb[0].mxu0
    %391 = vdwg.mxu0
    %v392 = vmax.f32 %v387, 0.0
    %v393 = vpack.c.bf16 %v392, %v392
    %v394 = vld [vmem:[#allocation7] sm:$0xf]
    %v395 = vld [vmem:[#allocation7 + $0x4] sm:$0xf]
    %v396 = vld [vmem:[#allocation7 + $0x8] sm:$0xf]
    %v397 = vld [vmem:[#allocation7 + $0xc] sm:$0xf]
    %v398 = vld [vmem:[#allocation7 + $0x10] sm:$0xf]
    %v399 = vld [vmem:[#allocation7 + $0x14] sm:$0xf]
    %v400 = vld [vmem:[#allocation7 + $0x18] sm:$0xf]
    %v401 = vld [vmem:[#allocation7 + $0x1c] sm:$0xf]
    %v402 = vld [vmem:[#allocation7 + $0x20] sm:$0xf]
    %v403 = vld [vmem:[#allocation7 + $0x24] sm:$0xf]
    %v404 = vld [vmem:[#allocation7 + $0x28] sm:$0xf]
    %v405 = vld [vmem:[#allocation7 + $0x2c] sm:$0xf]
    %v406 = vld [vmem:[#allocation7 + $0x30] sm:$0xf]
    %v407 = vld [vmem:[#allocation7 + $0x34] sm:$0xf]
    %v408 = vld [vmem:[#allocation7 + $0x38] sm:$0xf]
    %v409 = vld [vmem:[#allocation7 + $0x3c] sm:$0xf]
    %v410 = vld [vmem:[%s8] sm:$0x1]
    %v412 = vlaneseq
    %v413 = vshrl.u32 %v412, 7
    %v414 = vsub.s32 0, %v413
    %v415 = vrot.slane %v410, %v414
    %v433 = vunpack.c.l.b16 %v394
    %v434 = vunpack.c.l.b16 %v395
    %v435 = vunpack.c.l.b16 %v396
    %v436 = vunpack.c.l.b16 %v397
    %v437 = vunpack.c.l.b16 %v398
    %v438 = vunpack.c.l.b16 %v399
    %v439 = vunpack.c.l.b16 %v400
    %v440 = vunpack.c.l.b16 %v401
    %v441 = vunpack.c.l.b16 %v402
    %v442 = vunpack.c.l.b16 %v403
    %v443 = vunpack.c.l.b16 %v404
    %v444 = vunpack.c.l.b16 %v405
    %v445 = vunpack.c.l.b16 %v406
    %v446 = vunpack.c.l.b16 %v407
    %v447 = vunpack.c.l.b16 %v408
    %v448 = vunpack.c.l.b16 %v409
    %v449 = vpack.c.b16 %v434, %v433
    %v450 = vpack.c.b16 %v436, %v435
    %v451 = vpack.c.b16 %v438, %v437
    %v452 = vpack.c.b16 %v440, %v439
    %v453 = vpack.c.b16 %v442, %v441
    %v454 = vpack.c.b16 %v444, %v443
    %v455 = vpack.c.b16 %v446, %v445
    %v456 = vpack.c.b16 %v448, %v447
    %465 = vmatprep.subr.bf16.mxu0 0
    %466 = vmatpush1.bf16.msra.mxu0 %v449
    %467 = vmatprep.subr.bf16.mxu0 0
    %468 = vmatpush1.bf16.msra.mxu0 %v450
    %469 = vmatprep.subr.bf16.mxu0 0
    %470 = vmatpush1.bf16.msra.mxu0 %v451
    %471 = vmatprep.subr.bf16.mxu0 0
    %472 = vmatpush1.bf16.msra.mxu0 %v452
    %473 = vmatprep.subr.bf16.mxu0 0
    %474 = vmatpush1.bf16.msra.mxu0 %v453
    %475 = vmatprep.subr.bf16.mxu0 0
    %476 = vmatpush1.bf16.msra.mxu0 %v454
    %477 = vmatprep.subr.bf16.mxu0 0
    %478 = vmatpush1.bf16.msra.mxu0 %v455
    %479 = vmatprep.subr.bf16.mxu0 0
    %480 = vmatpush1.bf16.msra.mxu0 %v456
    %481 = vmatprep.subr.bf16.mxu0 0
    %482 = vmatpush1.bf16.msra.mxu0 0
    %483 = vmatprep.subr.bf16.mxu0 0
    %484 = vmatpush1.bf16.msra.mxu0 0
    %485 = vmatprep.subr.bf16.mxu0 0
    %486 = vmatpush1.bf16.msra.mxu0 0
    %487 = vmatprep.subr.bf16.mxu0 0
    %488 = vmatpush1.bf16.msra.mxu0 0
    %489 = vmatprep.subr.bf16.mxu0 0
    %490 = vmatpush1.bf16.msra.mxu0 0
    %491 = vmatprep.subr.bf16.mxu0 0
    %492 = vmatpush1.bf16.msra.mxu0 0
    %493 = vmatprep.subr.bf16.mxu0 0
    %494 = vmatpush1.bf16.msra.mxu0 0
    %495 = vmatprep.subr.bf16.mxu0 0
    %496 = vmatpush1.bf16.msra.mxu0 0
    %497 = vmatprep.mubr.bf16.mxu0 0
    %498 = vmatmul.mubr.bf16.gmra.mrb[0].mxu0 %v393
    %v499 = vpop.f32.mrb[0].mxu0
    %v500 = vadd.f32 %v415, %v499
    %v501 = vpop.f32.mrb[0].mxu0
    %v502 = vpop.f32.mrb[0].mxu0
    %v503 = vpop.f32.mrb[0].mxu0
    %504 = vdwg.mxu0
    %v505 = vmax.f32 %v500, 0.0
    %v506 = vpack.c.bf16 %v505, %v505
    %v507 = vld [vmem:[%s9] sm:$0xf]
    %v508 = vld [vmem:[%s9 + $0x4] sm:$0xf]
    %v509 = vld [vmem:[%s9 + $0x8] sm:$0xf]
    %v510 = vld [vmem:[%s9 + $0xc] sm:$0xf]
    %v511 = vld [vmem:[%s9 + $0x10] sm:$0xf]
    %v512 = vld [vmem:[%s9 + $0x14] sm:$0xf]
    %v513 = vld [vmem:[%s9 + $0x18] sm:$0xf]
    %v514 = vld [vmem:[%s9 + $0x1c] sm:$0xf]
    %v515 = vld [vmem:[%s9 + $0x20] sm:$0xf]
    %v516 = vld [vmem:[%s9 + $0x24] sm:$0xf]
    %v517 = vld [vmem:[%s9 + $0x28] sm:$0xf]
    %v518 = vld [vmem:[%s9 + $0x2c] sm:$0xf]
    %v519 = vld [vmem:[%s9 + $0x30] sm:$0xf]
    %v520 = vld [vmem:[%s9 + $0x34] sm:$0xf]
    %v521 = vld [vmem:[%s9 + $0x38] sm:$0xf]
    %v522 = vld [vmem:[%s9 + $0x3c] sm:$0xf]
    %v523 = vld [vmem:[%s10] sm:$0x1]
    %v525 = vlaneseq
    %v526 = vshrl.u32 %v525, 7
    %v527 = vsub.s32 0, %v526
    %v528 = vrot.slane %v523, %v527
    %v546 = vunpack.c.l.b16 %v507
    %v547 = vunpack.c.l.b16 %v508
    %v548 = vunpack.c.l.b16 %v509
    %v549 = vunpack.c.l.b16 %v510
    %v550 = vunpack.c.l.b16 %v511
    %v551 = vunpack.c.l.b16 %v512
    %v552 = vunpack.c.l.b16 %v513
    %v553 = vunpack.c.l.b16 %v514
    %v554 = vunpack.c.l.b16 %v515
    %v555 = vunpack.c.l.b16 %v516
    %v556 = vunpack.c.l.b16 %v517
    %v557 = vunpack.c.l.b16 %v518
    %v558 = vunpack.c.l.b16 %v519
    %v559 = vunpack.c.l.b16 %v520
    %v560 = vunpack.c.l.b16 %v521
    %v561 = vunpack.c.l.b16 %v522
    %v562 = vpack.c.b16 %v547, %v546
    %v563 = vpack.c.b16 %v549, %v548
    %v564 = vpack.c.b16 %v551, %v550
    %v565 = vpack.c.b16 %v553, %v552
    %v566 = vpack.c.b16 %v555, %v554
    %v567 = vpack.c.b16 %v557, %v556
    %v568 = vpack.c.b16 %v559, %v558
    %v569 = vpack.c.b16 %v561, %v560
    %578 = vmatprep.subr.bf16.mxu0 0
    %579 = vmatpush1.bf16.msra.mxu0 %v562
    %580 = vmatprep.subr.bf16.mxu0 0
    %581 = vmatpush1.bf16.msra.mxu0 %v563
    %582 = vmatprep.subr.bf16.mxu0 0
    %583 = vmatpush1.bf16.msra.mxu0 %v564
    %584 = vmatprep.subr.bf16.mxu0 0
    %585 = vmatpush1.bf16.msra.mxu0 %v565
    %586 = vmatprep.subr.bf16.mxu0 0
    %587 = vmatpush1.bf16.msra.mxu0 %v566
    %588 = vmatprep.subr.bf16.mxu0 0
    %589 = vmatpush1.bf16.msra.mxu0 %v567
    %590 = vmatprep.subr.bf16.mxu0 0
    %591 = vmatpush1.bf16.msra.mxu0 %v568
    %592 = vmatprep.subr.bf16.mxu0 0
    %593 = vmatpush1.bf16.msra.mxu0 %v569
    %594 = vmatprep.subr.bf16.mxu0 0
    %595 = vmatpush1.bf16.msra.mxu0 0
    %596 = vmatprep.subr.bf16.mxu0 0
    %597 = vmatpush1.bf16.msra.mxu0 0
    %598 = vmatprep.subr.bf16.mxu0 0
    %599 = vmatpush1.bf16.msra.mxu0 0
    %600 = vmatprep.subr.bf16.mxu0 0
    %601 = vmatpush1.bf16.msra.mxu0 0
    %602 = vmatprep.subr.bf16.mxu0 0
    %603 = vmatpush1.bf16.msra.mxu0 0
    %604 = vmatprep.subr.bf16.mxu0 0
    %605 = vmatpush1.bf16.msra.mxu0 0
    %606 = vmatprep.subr.bf16.mxu0 0
    %607 = vmatpush1.bf16.msra.mxu0 0
    %608 = vmatprep.subr.bf16.mxu0 0
    %609 = vmatpush1.bf16.msra.mxu0 0
    %610 = vmatprep.mubr.bf16.mxu0 0
    %611 = vmatmul.mubr.bf16.gmra.mrb[0].mxu0 %v506
    %v612 = vpop.f32.mrb[0].mxu0
    %v613 = vadd.f32 %v528, %v612
    %v614 = vpop.f32.mrb[0].mxu0
    %v615 = vpop.f32.mrb[0].mxu0
    %v616 = vpop.f32.mrb[0].mxu0
    %617 = vdwg.mxu0
    %618 = vxpose.xlu0.b32.start [1/16] %v613, 128
    %619 = vxpose.xlu0.b32.cont [2/16] 0.0, 128
    %620 = vxpose.xlu0.b32.cont [3/16] 0.0, 128
    %621 = vxpose.xlu0.b32.cont [4/16] 0.0, 128
    %622 = vxpose.xlu0.b32.cont [5/16] 0.0, 128
    %623 = vxpose.xlu0.b32.cont [6/16] 0.0, 128
    %624 = vxpose.xlu0.b32.cont [7/16] 0.0, 128
    %625 = vxpose.xlu0.b32.cont [8/16] 0.0, 128
    %626 = vxpose.xlu0.b32.cont [9/16] 0.0, 128
    %627 = vxpose.xlu0.b32.cont [10/16] 0.0, 128
    %628 = vxpose.xlu0.b32.cont [11/16] 0.0, 128
    %629 = vxpose.xlu0.b32.cont [12/16] 0.0, 128
    %630 = vxpose.xlu0.b32.cont [13/16] 0.0, 128
    %631 = vxpose.xlu0.b32.cont [14/16] 0.0, 128
    %632 = vxpose.xlu0.b32.cont [15/16] 0.0, 128
    %633 = vxpose.xlu0.b32.end [16/16] 0.0, 128
    %v634 = vpop.trf.xlu0
    %v635 = vpop.trf.xlu0
    %v636 = vpop.trf.xlu0
    %v637 = vpop.trf.xlu0
    %v638 = vpop.trf.xlu0
    %v639 = vpop.trf.xlu0
    %v640 = vpop.trf.xlu0
    %v641 = vpop.trf.xlu0
    %v642 = vpop.trf.xlu0
    %v643 = vpop.trf.xlu0
    %v644 = vpop.trf.xlu0
    %v645 = vpop.trf.xlu0
    %v646 = vpop.trf.xlu0
    %v647 = vpop.trf.xlu0
    %v648 = vpop.trf.xlu0
    %v649 = vpop.trf.xlu0
    %vm650 = vcmask 64512
    %651 = vst.msk [vmem:[#allocation8] sm:$0xff] %vm650, %v634
    // Predicated region
    $region58: #{tpu_custom_call.1} parent=1 // pred_check
      _
    $region59: #{tpu_custom_call.1} parent=1 // pred_check_branch
      %653 = sbr.rel (0) target = $region61
    $region60: #{tpu_custom_call.1} parent=1 // pred_region
      %s655 = ssub.s32 128, 128
      %656 = vsyncadd [#allocation4], %s655
      %s658 = sshll.u32 [#allocation8], 4
      %s659 = int_to_ptr.vmem [resolvable:$true] %s658
      %661 = dma.vmem_to_hbm [thread:$0]  %s659, 128, %s11, [#allocation4]
    $region61: #{tpu_custom_call.1} parent=1 // pred_fallthru
      _
    // Predicated region
    $region62: #{tpu_custom_call.1} parent=1 // pred_check
      _
    $region63: #{tpu_custom_call.1} parent=1 // pred_check_branch
      %663 = sbr.rel (0) target = $region65
    $region64: #{tpu_custom_call.1} parent=1 // pred_region
      %664 = dma.done [#allocation4], 128
    $region65: #{tpu_custom_call.1} parent=1 // pred_fallthru
      _
    %665 = vsyncpa [#allocation3], 1
    %666 = vsyncpa [#allocation6], 1
    %667 = vsyncpa [#allocation4], 1

</llo_original>
